<compile_context>
chip_gen: v5e
topology: v5e:2x2
jax: 0.10.0
libtpu: 0.0.40
codegen_flags: <defaults>
</compile_context>

<pallas_src>
import functools

import jax
import jax.numpy as jnp
from jax.experimental import pallas as pl
from jax.experimental.pallas import tpu as pltpu


def _fused_mlp_kernel(*refs, num_layers: int):
    """refs = (x_ref, w0_ref, b0_ref, ..., w{L-1}_ref, b{L-1}_ref, o_ref).

    x:  (Bp, Din)           activations (batch padded to a sublane multiple)
    wi: (Din_i, Dout_i)     pre-transposed weights
    bi: (1, Dout_i)         biases
    """
    x_ref = refs[0]
    o_ref = refs[-1]

    x = x_ref[...].astype(jnp.float32)
    # Unrolled layer loop; activations live in vregs between layers.
    for i in range(num_layers):
        w = refs[1 + 2 * i][...]
        b = refs[2 + 2 * i][...]
        x = jnp.dot(x, w, preferred_element_type=jnp.float32) + b
        if i < num_layers - 1:          # ReLU after every layer except last
            x = jnp.maximum(x, 0.0)
    o_ref[...] = x.astype(o_ref.dtype)


def _fused_mlp_forward(latent, weights, biases):
    """latent: (B, latent_dim); weights[i]: (Din_i, Dout_i); biases[i]: (1, Dout_i)."""
    num_layers = len(weights)
    batch = latent.shape[0]
    dout = weights[-1].shape[1]

    # Pad batch to one full sublane tile (multiple of 8).
    pad_b = (-batch) % 8
    x = jnp.pad(latent, ((0, pad_b), (0, 0))) if pad_b else latent
    bp = batch + pad_b

    inputs = [x]
    for w, b in zip(weights, biases):
        inputs += [w, b]

    vmem_spec = pl.BlockSpec(memory_space=pltpu.MemorySpace.VMEM)
    kernel = functools.partial(_fused_mlp_kernel, num_layers=num_layers)

    out = pl.pallas_call(
        kernel,
        out_shape=jax.ShapeDtypeStruct((bp, dout), latent.dtype),
        in_specs=[vmem_spec] * len(inputs),
        out_specs=vmem_spec,
    )(*inputs)

    return out[:batch] if pad_b else out


_fused_mlp_forward_jit = jax.jit(_fused_mlp_forward)


class LatentToModulation:
    """JAX/Pallas port of the PyTorch LatentToModulation module."""

    def __init__(self, latent_dim, num_modulations, dim_hidden, num_layers,
                 key=jax.random.PRNGKey(0), dtype=jnp.float32):
        self.latent_dim = latent_dim
        self.num_modulations = num_modulations
        self.dim_hidden = dim_hidden
        self.num_layers = num_layers

        # Same layer stack as the PyTorch module.
        if num_layers == 1:
            dims = [(latent_dim, num_modulations)]
        else:
            dims = [(latent_dim, dim_hidden)]
            for _ in range(max(num_layers - 2, 0)):
                dims.append((dim_hidden, dim_hidden))
            dims.append((dim_hidden, num_modulations))

        # nn.Linear-style init U(-1/sqrt(fan_in), +1/sqrt(fan_in)); weights are
        # stored pre-transposed as (Din, Dout) for a transpose-free MXU feed,
        # biases as (1, Dout) so no per-call reshape is needed.
        self.weights = []
        self.biases = []
        for (din, dout) in dims:
            key, kw, kb = jax.random.split(key, 3)
            bound = 1.0 / (din ** 0.5)
            w = jax.random.uniform(kw, (din, dout), dtype, -bound, bound)
            b = jax.random.uniform(kb, (1, dout), dtype, -bound, bound)
            self.weights.append(w)
            self.biases.append(b)

    def __call__(self, latent):
        return _fused_mlp_forward_jit(latent, self.weights, self.biases)


if __name__ == "__main__":
    # Small shapes consistent with the module's forward: latent is (B, latent_dim).
    batch = 4
    latent_dim = 32
    num_modulations = 128
    dim_hidden = 64
    num_layers = 3

    key = jax.random.PRNGKey(0)
    k_latent, k_params, k_params1 = jax.random.split(key, 3)
    latent = jax.random.normal(k_latent, (batch, latent_dim), jnp.float32)

    module = LatentToModulation(latent_dim, num_modulations, dim_hidden,
                                num_layers, key=k_params)

    out = module(latent)
    out = jax.block_until_ready(out)
    assert out.shape == (batch, num_modulations), out.shape

    # Pure-JAX reference of the same params (weights already (Din, Dout)).
    x_ref = latent
    for i, (w, b) in enumerate(zip(module.weights, module.biases)):
        x_ref = x_ref @ w + b
        if i < len(module.weights) - 1:
            x_ref = jnp.maximum(x_ref, 0.0)
    assert jnp.allclose(out, x_ref, atol=1e-4, rtol=1e-4)

    # Also exercise the num_layers == 1 branch (single Linear, no ReLU).
    module1 = LatentToModulation(latent_dim, num_modulations, dim_hidden,
                                 num_layers=1, key=k_params1)
    out1 = jax.block_until_ready(module1(latent))
    ref1 = latent @ module1.weights[0] + module1.biases[0]
    assert out1.shape == (batch, num_modulations), out1.shape
    assert jnp.allclose(out1, ref1, atol=1e-4, rtol=1e-4)

    print("KERNEL_OK")
</pallas_src>

<mosaic_0001>
module attributes {stable_mosaic.version = 11 : i64} {
  func.func @_fused_mlp_kernel(%arg0: memref<8x32xf32, #tpu.memory_space<vmem>>, %arg1: memref<32x64xf32, #tpu.memory_space<vmem>>, %arg2: memref<1x64xf32, #tpu.memory_space<vmem>>, %arg3: memref<64x64xf32, #tpu.memory_space<vmem>>, %arg4: memref<1x64xf32, #tpu.memory_space<vmem>>, %arg5: memref<64x128xf32, #tpu.memory_space<vmem>>, %arg6: memref<1x128xf32, #tpu.memory_space<vmem>>, %arg7: memref<8x128xf32, #tpu.memory_space<vmem>>) attributes {dimension_semantics = [], scalar_prefetch = 0 : i64, scratch_operands = 0 : i64, tpu.core_type = #tpu.core_type<tc>} {
    %c0 = arith.constant 0 : index
    %c0_0 = arith.constant 0 : index
    %0 = vector.load %arg0[%c0, %c0_0] : memref<8x32xf32, #tpu.memory_space<vmem>>, vector<8x32xf32>
    %c0_1 = arith.constant 0 : index
    %c0_2 = arith.constant 0 : index
    %1 = vector.load %arg1[%c0_1, %c0_2] : memref<32x64xf32, #tpu.memory_space<vmem>>, vector<32x64xf32>
    %c0_3 = arith.constant 0 : index
    %c0_4 = arith.constant 0 : index
    %2 = vector.load %arg2[%c0_3, %c0_4] : memref<1x64xf32, #tpu.memory_space<vmem>>, vector<1x64xf32>
    %cst = arith.constant dense<0.000000e+00> : vector<8x64xf32>
    %3 = tpu.matmul %0, %1, %cst {dimension_numbers = #tpu.dot_dimension_numbers<[1], [0], [0], [1], [0, 0, 1, 1], [], []>} : vector<8x32xf32>, vector<32x64xf32>, vector<8x64xf32> -> vector<8x64xf32>
    %4 = vector.broadcast %2 : vector<1x64xf32> to vector<8x64xf32>
    %5 = arith.addf %3, %4 : vector<8x64xf32>
    %cst_5 = arith.constant 0.000000e+00 : f32
    %6 = vector.broadcast %cst_5 : f32 to vector<8x64xf32>
    %7 = arith.maximumf %5, %6 : vector<8x64xf32>
    %c0_6 = arith.constant 0 : index
    %c0_7 = arith.constant 0 : index
    %8 = vector.load %arg3[%c0_6, %c0_7] : memref<64x64xf32, #tpu.memory_space<vmem>>, vector<64x64xf32>
    %c0_8 = arith.constant 0 : index
    %c0_9 = arith.constant 0 : index
    %9 = vector.load %arg4[%c0_8, %c0_9] : memref<1x64xf32, #tpu.memory_space<vmem>>, vector<1x64xf32>
    %cst_10 = arith.constant dense<0.000000e+00> : vector<8x64xf32>
    %10 = tpu.matmul %7, %8, %cst_10 {dimension_numbers = #tpu.dot_dimension_numbers<[1], [0], [0], [1], [0, 0, 1, 1], [], []>} : vector<8x64xf32>, vector<64x64xf32>, vector<8x64xf32> -> vector<8x64xf32>
    %11 = vector.broadcast %9 : vector<1x64xf32> to vector<8x64xf32>
    %12 = arith.addf %10, %11 : vector<8x64xf32>
    %cst_11 = arith.constant 0.000000e+00 : f32
    %13 = vector.broadcast %cst_11 : f32 to vector<8x64xf32>
    %14 = arith.maximumf %12, %13 : vector<8x64xf32>
    %c0_12 = arith.constant 0 : index
    %c0_13 = arith.constant 0 : index
    %15 = vector.load %arg5[%c0_12, %c0_13] : memref<64x128xf32, #tpu.memory_space<vmem>>, vector<64x128xf32>
    %c0_14 = arith.constant 0 : index
    %c0_15 = arith.constant 0 : index
    %16 = vector.load %arg6[%c0_14, %c0_15] : memref<1x128xf32, #tpu.memory_space<vmem>>, vector<1x128xf32>
    %cst_16 = arith.constant dense<0.000000e+00> : vector<8x128xf32>
    %17 = tpu.matmul %14, %15, %cst_16 {dimension_numbers = #tpu.dot_dimension_numbers<[1], [0], [0], [1], [0, 0, 1, 1], [], []>} : vector<8x64xf32>, vector<64x128xf32>, vector<8x128xf32> -> vector<8x128xf32>
    %18 = vector.broadcast %16 : vector<1x128xf32> to vector<8x128xf32>
    %19 = arith.addf %17, %18 : vector<8x128xf32>
    %c0_17 = arith.constant 0 : index
    %c0_18 = arith.constant 0 : index
    %20 = vector.load %arg7[%c0_17, %c0_18] : memref<8x128xf32, #tpu.memory_space<vmem>>, vector<8x128xf32>
    tpu.vector_store %arg7[%c0_17, %c0_18], %19 {strides = array<i32>} : memref<8x128xf32, #tpu.memory_space<vmem>>, vector<8x128xf32>,
    return
  }
}

</mosaic_0001>

<llo_original>
// kernel: _fused_mlp_forward.1
$region0: #{_fused_mlp_forward.1}
  #allocation0 [shape = 'u32[]', space=smem, size = 0x4, offset = 0x4, fixed_abs, tag = 'smem constant byte address 0x4 - core index']
  #allocation1 [shape = 'u32[72,128]{1,0:T(1,128)}', space=vmem, size = 0x9000, scoped, tag = 'internal scratch']
  %s0 = inlined_call_operand.vmem [shape: f32[8,32], index: 0, kind: input, shape index: {}]
  %s1 = inlined_call_operand.hbm [shape: f32[32,64], index: 1, kind: input, shape index: {}]
  %s2 = inlined_call_operand.vmem [shape: f32[1,64], index: 2, kind: input, shape index: {}]
  %s3 = inlined_call_operand.hbm [shape: f32[64,64], index: 3, kind: input, shape index: {}]
  %s4 = inlined_call_operand.vmem [shape: f32[1,64], index: 4, kind: input, shape index: {}]
  %s5 = inlined_call_operand.hbm [shape: f32[64,128], index: 5, kind: input, shape index: {}]
  %s6 = inlined_call_operand.vmem [shape: f32[1,128], index: 6, kind: input, shape index: {}]
  %s7 = inlined_call_operand.vmem [shape: f32[8,128], index: 7, kind: output, shape index: {}]
  %s8 = sld [smem:[#allocation0]]
  $region50: #{_fused_mlp_forward.1} parent=0
    _
  %s10 = ssub.s32 1, %s8
  %s11 = scalar_select 0, %s10, %s8
  $region1: #{_fused_mlp_forward.1} parent=0
    #allocation2 [shape = 'u8[16384]{0}', space=vmem, size = 0x4000, scoped, tag = 'input window, operand 1, single buffered']
    #allocation3 [shape = 's32[1]{0}', space=sflag, size = 0x4, scoped, tag = 'scoped memory for _fused_mlp_forward.1']
    #allocation4 [shape = 'u8[32768]{0}', space=vmem, size = 0x8000, scoped, tag = 'input window, operand 3, single buffered']
    #allocation5 [shape = 's32[1]{0}', space=sflag, size = 0x4, scoped, tag = 'scoped memory for _fused_mlp_forward.1']
    #allocation6 [shape = 'u8[32768]{0}', space=vmem, size = 0x8000, scoped, tag = 'input window, operand 5, single buffered']
    %12 = vsyncpa [#allocation3], 0
    %13 = vsyncpa [#allocation5], 0
    // Predicated region
    $region2: #{_fused_mlp_forward.1} parent=1 // pred_check
      _
    $region3: #{_fused_mlp_forward.1} parent=1 // pred_check_branch
      %15 = sbr.rel (0) target = $region5
    $region4: #{_fused_mlp_forward.1} parent=1 // pred_region
      _
    $region5: #{_fused_mlp_forward.1} parent=1 // pred_fallthru
      _
    // Predicated region
    $region6: #{_fused_mlp_forward.1} parent=1 // pred_check
      _
    $region7: #{_fused_mlp_forward.1} parent=1 // pred_check_branch
      %17 = sbr.rel (0) target = $region9
    $region8: #{_fused_mlp_forward.1} parent=1 // pred_region
      %19 = vsyncadd [#allocation3], 0
      %s20 = sshll.u32 %s1, 4
      %s21 = int_to_ptr.hbm [resolvable:$true] %s20
      %s22 = sshll.u32 [#allocation2], 4
      %s23 = int_to_ptr.vmem [resolvable:$true] %s22
      %28 = dma.hbm_to_vmem [thread:$0]  %s21, 512, %s23, [#allocation3], 128, 128, 8
    $region9: #{_fused_mlp_forward.1} parent=1 // pred_fallthru
      _
    // Predicated region
    $region10: #{_fused_mlp_forward.1} parent=1 // pred_check
      _
    $region11: #{_fused_mlp_forward.1} parent=1 // pred_check_branch
      %30 = sbr.rel (0) target = $region13
    $region12: #{_fused_mlp_forward.1} parent=1 // pred_region
      _
    $region13: #{_fused_mlp_forward.1} parent=1 // pred_fallthru
      _
    // Predicated region
    $region14: #{_fused_mlp_forward.1} parent=1 // pred_check
      _
    $region15: #{_fused_mlp_forward.1} parent=1 // pred_check_branch
      %32 = sbr.rel (0) target = $region17
    $region16: #{_fused_mlp_forward.1} parent=1 // pred_region
      %34 = vsyncadd [#allocation5], 0
      %s35 = sshll.u32 %s3, 4
      %s36 = int_to_ptr.hbm [resolvable:$true] %s35
      %s37 = sshll.u32 [#allocation4], 4
      %s38 = int_to_ptr.vmem [resolvable:$true] %s37
      %43 = dma.hbm_to_vmem [thread:$0]  %s36, 1024, %s38, [#allocation5], 128, 128, 8
    $region17: #{_fused_mlp_forward.1} parent=1 // pred_fallthru
      _
    // Predicated region
    $region18: #{_fused_mlp_forward.1} parent=1 // pred_check
      _
    $region19: #{_fused_mlp_forward.1} parent=1 // pred_check_branch
      %45 = sbr.rel (0) target = $region21
    $region20: #{_fused_mlp_forward.1} parent=1 // pred_region
      _
    $region21: #{_fused_mlp_forward.1} parent=1 // pred_fallthru
      _
    // Predicated region
    $region22: #{_fused_mlp_forward.1} parent=1 // pred_check
      _
    $region23: #{_fused_mlp_forward.1} parent=1 // pred_check_branch
      %47 = sbr.rel (0) target = $region25
    $region24: #{_fused_mlp_forward.1} parent=1 // pred_region
      %49 = vsyncadd [#allocation5], 0
      %s50 = sshll.u32 %s5, 4
      %s51 = int_to_ptr.hbm [resolvable:$true] %s50
      %s52 = sshll.u32 [#allocation6], 4
      %s53 = int_to_ptr.vmem [resolvable:$true] %s52
      %58 = dma.hbm_to_vmem [thread:$0]  %s51, 1024, %s53, [#allocation5], 128, 128, 8
    $region25: #{_fused_mlp_forward.1} parent=1 // pred_fallthru
      _
    // Predicated region
    $region26: #{_fused_mlp_forward.1} parent=1 // pred_check
      _
    $region27: #{_fused_mlp_forward.1} parent=1 // pred_check_branch
      %60 = sbr.rel (0) target = $region29
    $region28: #{_fused_mlp_forward.1} parent=1 // pred_region
      _
    $region29: #{_fused_mlp_forward.1} parent=1 // pred_fallthru
      _
    // Predicated region
    $region30: #{_fused_mlp_forward.1} parent=1 // pred_check
      _
    $region31: #{_fused_mlp_forward.1} parent=1 // pred_check_branch
      %62 = sbr.rel (0) target = $region33
    $region32: #{_fused_mlp_forward.1} parent=1 // pred_region
      %64 = dma.done [#allocation3], 512
    $region33: #{_fused_mlp_forward.1} parent=1 // pred_fallthru
      _
    // Predicated region
    $region34: #{_fused_mlp_forward.1} parent=1 // pred_check
      _
    $region35: #{_fused_mlp_forward.1} parent=1 // pred_check_branch
      %66 = sbr.rel (0) target = $region37
    $region36: #{_fused_mlp_forward.1} parent=1 // pred_region
      %68 = dma.done [#allocation5], 1024
    $region37: #{_fused_mlp_forward.1} parent=1 // pred_fallthru
      _
    // Predicated region
    $region38: #{_fused_mlp_forward.1} parent=1 // pred_check
      _
    $region39: #{_fused_mlp_forward.1} parent=1 // pred_check_branch
      %70 = sbr.rel (0) target = $region41
    $region40: #{_fused_mlp_forward.1} parent=1 // pred_region
      %72 = dma.done [#allocation5], 1024
    $region41: #{_fused_mlp_forward.1} parent=1 // pred_fallthru
      _
    %v73 = vld [vmem:[%s0] sm:$0xff]
    %v74 = vld [vmem:[#allocation2] sm:$0xff]
    %v75 = vld [vmem:[#allocation2 + $0x8] sm:$0xff]
    %v76 = vld [vmem:[#allocation2 + $0x10] sm:$0xff]
    %v77 = vld [vmem:[#allocation2 + $0x18] sm:$0xff]
    %v78 = vld [vmem:[%s2] sm:$0x1]
    %v80 = vperm.slane %v78, 0
    %vm82 = vcmask 261120
    %v84 = vsel %vm82, %v73, 0
    %86 = vmatpush.msra.mxu0 0.0
    %87 = vmatpush.msra.mxu0 0.0
    %88 = vmatpush.msra.mxu0 0.0
    %89 = vmatpush.msra.mxu0 0.0
    %90 = vmatpush.msra.mxu0 0.0
    %91 = vmatpush.msra.mxu0 0.0
    %92 = vmatpush.msra.mxu0 0.0
    %93 = vmatpush.msra.mxu0 0.0
    %94 = vmatpush.msra.mxu0 0.0
    %95 = vmatpush.msra.mxu0 0.0
    %96 = vmatpush.msra.mxu0 0.0
    %97 = vmatpush.msra.mxu0 0.0
    %98 = vmatpush.msra.mxu0 %v77
    %99 = vmatpush.msra.mxu0 %v76
    %100 = vmatpush.msra.mxu0 %v75
    %101 = vmatpush.msra.mxu0 %v74
    %102 = vmatmul.f32.gmra.mxu0 %v84
    %v103 = vpop.f32.mrf.mxu0
    %v104 = vadd.f32 %v80, %v103
    %105 = vdwg.mxu0
    %v106 = vmax.f32 %v104, 0.0
    %v107 = vld [vmem:[#allocation4] sm:$0xff]
    %v108 = vld [vmem:[#allocation4 + $0x8] sm:$0xff]
    %v109 = vld [vmem:[#allocation4 + $0x10] sm:$0xff]
    %v110 = vld [vmem:[#allocation4 + $0x18] sm:$0xff]
    %v111 = vld [vmem:[#allocation4 + $0x20] sm:$0xff]
    %v112 = vld [vmem:[#allocation4 + $0x28] sm:$0xff]
    %v113 = vld [vmem:[#allocation4 + $0x30] sm:$0xff]
    %v114 = vld [vmem:[#allocation4 + $0x38] sm:$0xff]
    %v115 = vld [vmem:[%s4] sm:$0x1]
    %v117 = vperm.slane %v115, 0
    %vm119 = vcmask 523264
    %v121 = vsel %vm119, %v106, 0
    %123 = vmatpush.msra.mxu0 0.0
    %124 = vmatpush.msra.mxu0 0.0
    %125 = vmatpush.msra.mxu0 0.0
    %126 = vmatpush.msra.mxu0 0.0
    %127 = vmatpush.msra.mxu0 0.0
    %128 = vmatpush.msra.mxu0 0.0
    %129 = vmatpush.msra.mxu0 0.0
    %130 = vmatpush.msra.mxu0 0.0
    %131 = vmatpush.msra.mxu0 %v114
    %132 = vmatpush.msra.mxu0 %v113
    %133 = vmatpush.msra.mxu0 %v112
    %134 = vmatpush.msra.mxu0 %v111
    %135 = vmatpush.msra.mxu0 %v110
    %136 = vmatpush.msra.mxu0 %v109
    %137 = vmatpush.msra.mxu0 %v108
    %138 = vmatpush.msra.mxu0 %v107
    %139 = vmatmul.f32.gmra.mxu0 %v121
    %v140 = vpop.f32.mrf.mxu0
    %v141 = vadd.f32 %v117, %v140
    %142 = vdwg.mxu0
    %v143 = vmax.f32 %v141, 0.0
    %v144 = vld [vmem:[#allocation6] sm:$0xff]
    %v145 = vld [vmem:[#allocation6 + $0x8] sm:$0xff]
    %v146 = vld [vmem:[#allocation6 + $0x10] sm:$0xff]
    %v147 = vld [vmem:[#allocation6 + $0x18] sm:$0xff]
    %v148 = vld [vmem:[#allocation6 + $0x20] sm:$0xff]
    %v149 = vld [vmem:[#allocation6 + $0x28] sm:$0xff]
    %v150 = vld [vmem:[#allocation6 + $0x30] sm:$0xff]
    %v151 = vld [vmem:[#allocation6 + $0x38] sm:$0xff]
    %v152 = vld [vmem:[%s6] sm:$0x1]
    %v154 = vperm.slane %v152, 0
    %v157 = vsel %vm119, %v143, 0
    %159 = vmatpush.msra.mxu0 0.0
    %160 = vmatpush.msra.mxu0 0.0
    %161 = vmatpush.msra.mxu0 0.0
    %162 = vmatpush.msra.mxu0 0.0
    %163 = vmatpush.msra.mxu0 0.0
    %164 = vmatpush.msra.mxu0 0.0
    %165 = vmatpush.msra.mxu0 0.0
    %166 = vmatpush.msra.mxu0 0.0
    %167 = vmatpush.msra.mxu0 %v151
    %168 = vmatpush.msra.mxu0 %v150
    %169 = vmatpush.msra.mxu0 %v149
    %170 = vmatpush.msra.mxu0 %v148
    %171 = vmatpush.msra.mxu0 %v147
    %172 = vmatpush.msra.mxu0 %v146
    %173 = vmatpush.msra.mxu0 %v145
    %174 = vmatpush.msra.mxu0 %v144
    %175 = vmatmul.f32.gmra.mxu0 %v157
    %v176 = vpop.f32.mrf.mxu0
    %v177 = vadd.f32 %v154, %v176
    %178 = vdwg.mxu0
    %179 = vst [vmem:[%s7] sm:$0xff] %v177
    // Predicated region
    $region42: #{_fused_mlp_forward.1} parent=1 // pred_check
      _
    $region43: #{_fused_mlp_forward.1} parent=1 // pred_check_branch
      %181 = sbr.rel (0) target = $region45
    $region44: #{_fused_mlp_forward.1} parent=1 // pred_region
      _
    $region45: #{_fused_mlp_forward.1} parent=1 // pred_fallthru
      _
    // Predicated region
    $region46: #{_fused_mlp_forward.1} parent=1 // pred_check
      _
    $region47: #{_fused_mlp_forward.1} parent=1 // pred_check_branch
      %183 = sbr.rel (0) target = $region49
    $region48: #{_fused_mlp_forward.1} parent=1 // pred_region
      _
    $region49: #{_fused_mlp_forward.1} parent=1 // pred_fallthru
      _
    %184 = vsyncpa [#allocation3], 1
    %185 = vsyncpa [#allocation5], 1

</llo_original>
